<compile_context>
chip_gen: v7x
topology: tpu7x:2x2x1
jax: 0.10.0
libtpu: 0.0.40
codegen_flags: <defaults>
</compile_context>

<pallas_src>
import jax
import jax.numpy as jnp
from jax.experimental import pallas as pl
from jax.experimental.pallas import tpu as pltpu

LANE = 128  # TPU vreg lane width


def gcn_kernel(a_blk_ref, x_ref, w1_ref, w2p_ref, bias_ref, o_ref):
    # ---- conv1 (reassociated): A_blk @ (x @ W1), then ReLU ----
    xw1 = jnp.dot(x_ref[...], w1_ref[...],
                  preferred_element_type=jnp.float32)                 # (GN, H)
    h = jnp.dot(a_blk_ref[...], xw1,
                preferred_element_type=jnp.float32)                   # (GN, H)
    h = jnp.maximum(h, jnp.float32(0.0))

    # ---- Dropout(p=0.3) ----
    # TODO(synk): eval-mode identity; training-mode stochastic masking would
    #             need pltpu.prng_seed + pltpu.prng_random_bits.

    # ---- conv2 (reassociated): A_blk @ (h @ W2_pad) ----
    hw2 = jnp.dot(h, w2p_ref[...],
                  preferred_element_type=jnp.float32)                 # (GN, Cpad)
    logits = jnp.dot(a_blk_ref[...], hw2,
                     preferred_element_type=jnp.float32)              # (GN, Cpad)

    # ---- log_softmax over the real class lanes only ----
    # Padded logits are exactly 0 (zero W2 columns), so adding the precomputed
    # bias row (0 for real classes, -1e30 for padded lanes) replaces the old
    # iota + compare + where mask with a single VPU add.
    masked = logits + bias_ref[...]
    m = jnp.max(masked, axis=1, keepdims=True)
    shifted = masked - m
    lse = jnp.log(jnp.sum(jnp.exp(shifted), axis=1, keepdims=True))

    # One fully sublane- and lane-dense (GN, Cpad) store — no masked vst.
    o_ref[...] = shifted - lse


def make_gcn_forward(matrix, w1, w2, batch, num_splits=1):
    """Build a fused batched GCN forward.

    matrix: (N, N) shared adjacency-like matrix
    w1:     (F, H) conv1 weight, stored (in, out) == torch weight.T
    w2:     (H, C) conv2 weight, stored (in, out)
    batch:  number of graphs per call
    num_splits: grid steps (1 for v5e/v6e; 2 on v7x to use both TensorCores)

    Returns forward(x) with x: (B, N, F) -> (B, N, C) log-probabilities.
    """
    n = matrix.shape[0]
    f, hdim = w1.shape
    assert w2.shape[0] == hdim
    c = w2.shape[1]
    assert batch % num_splits == 0
    g = batch // num_splits            # graphs handled per grid step
    gn = g * n                         # fused sublane rows per grid step
    c_pad = ((c + LANE - 1) // LANE) * LANE

    # --- one-time layout plumbing (hoisted out of the per-call path) ---
    a_blk = jnp.kron(jnp.eye(g, dtype=matrix.dtype), matrix)           # (gn, gn)
    w2_pad = jnp.zeros((hdim, c_pad), dtype=w2.dtype).at[:, :c].set(w2)
    bias = jnp.full((1, c_pad), -1e30, dtype=jnp.float32).at[:, :c].set(0.0)

    call = pl.pallas_call(
        gcn_kernel,
        out_shape=jax.ShapeDtypeStruct((batch * n, c_pad), jnp.float32),
        grid=(num_splits,),
        in_specs=[
            pl.BlockSpec((gn, gn), lambda i: (0, 0)),        # block-diag A (shared)
            pl.BlockSpec((gn, f), lambda i: (i, 0)),         # row-stacked x slice
            pl.BlockSpec((f, hdim), lambda i: (0, 0)),       # W1 (shared)
            pl.BlockSpec((hdim, c_pad), lambda i: (0, 0)),   # padded W2 (shared)
            pl.BlockSpec((1, c_pad), lambda i: (0, 0)),      # class-mask bias row
        ],
        out_specs=pl.BlockSpec((gn, c_pad), lambda i: (i, 0)),
        compiler_params=pltpu.CompilerParams(
            dimension_semantics=("parallel",),   # batch split shards over v7x's 2 TCs
        ),
    )

    def forward(x):
        x_flat = x.reshape(batch * n, f)                     # row-stacked batch
        out_padded = call(a_blk, x_flat, w1, w2_pad, bias)   # (B*N, Cpad)
        return out_padded.reshape(batch, n, c_pad)[:, :, :c]

    return jax.jit(forward)


def reference_forward_single(matrix, xg, w1, w2):
    h = jnp.maximum((matrix @ xg) @ w1, 0.0)
    z = (matrix @ h) @ w2
    return jax.nn.log_softmax(z, axis=1)


if __name__ == "__main__":
    # Small deterministic problem: 8 graphs x 16 nodes, 8 features, hidden=16, 4 classes.
    batch = 8
    num_nodes = 16
    num_node_features = 8
    hidden = 16
    num_classes = 4

    key = jax.random.PRNGKey(0)
    k_a, k_x, k_w1, k_w2 = jax.random.split(key, 4)

    # Symmetric-normalized-adjacency-like dense matrix (deterministic).
    matrix = jax.random.uniform(k_a, (num_nodes, num_nodes), dtype=jnp.float32) / num_nodes
    x = jax.random.normal(k_x, (batch, num_nodes, num_node_features), dtype=jnp.float32)

    # Deterministic "Linear(bias=False)" weights, stored as (in, out).
    w1 = jax.random.normal(k_w1, (num_node_features, hidden), dtype=jnp.float32) * 0.1
    w2 = jax.random.normal(k_w2, (hidden, num_classes), dtype=jnp.float32) * 0.1

    # num_splits=1 for v5e/v6e (single TensorCore); set num_splits=2 on v7x to
    # shard the fused batch across both TensorCores.
    forward = make_gcn_forward(matrix, w1, w2, batch, num_splits=1)
    out = jax.block_until_ready(forward(x))

    ref = jax.vmap(lambda xg: reference_forward_single(matrix, xg, w1, w2))(x)
    assert out.shape == (batch, num_nodes, num_classes)
    assert jnp.allclose(out, ref, atol=1e-5, rtol=1e-5), "mismatch vs reference"

    print("KERNEL_OK")
</pallas_src>

<mosaic_0001>
module attributes {stable_mosaic.version = 11 : i64} {
  func.func @gcn_kernel(%arg0: i32, %arg1: memref<128x128xf32, #tpu.memory_space<vmem>>, %arg2: memref<128x8xf32, #tpu.memory_space<vmem>>, %arg3: memref<8x16xf32, #tpu.memory_space<vmem>>, %arg4: memref<16x128xf32, #tpu.memory_space<vmem>>, %arg5: memref<1x128xf32, #tpu.memory_space<vmem>>, %arg6: memref<128x128xf32, #tpu.memory_space<vmem>>) attributes {dimension_semantics = [#tpu.dimension_semantics<parallel>], iteration_bounds = array<i64: 1>, scalar_prefetch = 0 : i64, scratch_operands = 0 : i64, tpu.core_type = #tpu.core_type<tc>, window_params = [{pipeline_mode = #tpu.pipeline_mode<synchronous>, transform_indices = @transform_0, window_bounds = array<i64: 128, 128>}, {transform_indices = @transform_1, window_bounds = array<i64: 128, 8>}, {pipeline_mode = #tpu.pipeline_mode<synchronous>, transform_indices = @transform_2, window_bounds = array<i64: 8, 16>}, {pipeline_mode = #tpu.pipeline_mode<synchronous>, transform_indices = @transform_3, window_bounds = array<i64: 16, 128>}, {pipeline_mode = #tpu.pipeline_mode<synchronous>, transform_indices = @transform_4, window_bounds = array<i64: 1, 128>}, {transform_indices = @transform_5, window_bounds = array<i64: 128, 128>}]} {
    %c0 = arith.constant 0 : index
    %c0_0 = arith.constant 0 : index
    %0 = vector.load %arg2[%c0, %c0_0] : memref<128x8xf32, #tpu.memory_space<vmem>>, vector<128x8xf32>
    %c0_1 = arith.constant 0 : index
    %c0_2 = arith.constant 0 : index
    %1 = vector.load %arg3[%c0_1, %c0_2] : memref<8x16xf32, #tpu.memory_space<vmem>>, vector<8x16xf32>
    %cst = arith.constant dense<0.000000e+00> : vector<128x16xf32>
    %2 = tpu.matmul %0, %1, %cst {dimension_numbers = #tpu.dot_dimension_numbers<[1], [0], [0], [1], [0, 0, 1, 1], [], []>} : vector<128x8xf32>, vector<8x16xf32>, vector<128x16xf32> -> vector<128x16xf32>
    %c0_3 = arith.constant 0 : index
    %c0_4 = arith.constant 0 : index
    %3 = vector.load %arg1[%c0_3, %c0_4] : memref<128x128xf32, #tpu.memory_space<vmem>>, vector<128x128xf32>
    %cst_5 = arith.constant dense<0.000000e+00> : vector<128x16xf32>
    %4 = tpu.matmul %3, %2, %cst_5 {dimension_numbers = #tpu.dot_dimension_numbers<[1], [0], [0], [1], [0, 0, 1, 1], [], []>} : vector<128x128xf32>, vector<128x16xf32>, vector<128x16xf32> -> vector<128x16xf32>
    %cst_6 = arith.constant 0.000000e+00 : f32
    %5 = vector.broadcast %cst_6 : f32 to vector<128x16xf32>
    %6 = arith.maximumf %4, %5 : vector<128x16xf32>
    %c0_7 = arith.constant 0 : index
    %c0_8 = arith.constant 0 : index
    %7 = vector.load %arg4[%c0_7, %c0_8] : memref<16x128xf32, #tpu.memory_space<vmem>>, vector<16x128xf32>
    %cst_9 = arith.constant dense<0.000000e+00> : vector<128x128xf32>
    %8 = tpu.matmul %6, %7, %cst_9 {dimension_numbers = #tpu.dot_dimension_numbers<[1], [0], [0], [1], [0, 0, 1, 1], [], []>} : vector<128x16xf32>, vector<16x128xf32>, vector<128x128xf32> -> vector<128x128xf32>
    %c0_10 = arith.constant 0 : index
    %c0_11 = arith.constant 0 : index
    %9 = vector.load %arg1[%c0_10, %c0_11] : memref<128x128xf32, #tpu.memory_space<vmem>>, vector<128x128xf32>
    %cst_12 = arith.constant dense<0.000000e+00> : vector<128x128xf32>
    %10 = tpu.matmul %9, %8, %cst_12 {dimension_numbers = #tpu.dot_dimension_numbers<[1], [0], [0], [1], [0, 0, 1, 1], [], []>} : vector<128x128xf32>, vector<128x128xf32>, vector<128x128xf32> -> vector<128x128xf32>
    %c0_13 = arith.constant 0 : index
    %c0_14 = arith.constant 0 : index
    %11 = vector.load %arg5[%c0_13, %c0_14] : memref<1x128xf32, #tpu.memory_space<vmem>>, vector<1x128xf32>
    %12 = vector.broadcast %11 : vector<1x128xf32> to vector<128x128xf32>
    %13 = arith.addf %10, %12 : vector<128x128xf32>
    %cst_15 = arith.constant dense<0xFF800000> : vector<128xf32>
    %14 = vector.multi_reduction <maximumf>, %13, %cst_15 [1] : vector<128x128xf32> to vector<128xf32>
    %15 = vector.shape_cast %14 : vector<128xf32> to vector<128x1xf32>
    %16 = vector.broadcast %15 : vector<128x1xf32> to vector<128x128xf32>
    %17 = arith.subf %13, %16 : vector<128x128xf32>
    %18 = math.exp %17 : vector<128x128xf32>
    %cst_16 = arith.constant dense<0.000000e+00> : vector<128xf32>
    %19 = vector.multi_reduction <add>, %18, %cst_16 [1] : vector<128x128xf32> to vector<128xf32>
    %20 = vector.shape_cast %19 : vector<128xf32> to vector<128x1xf32>
    %21 = math.log %20 : vector<128x1xf32>
    %22 = vector.broadcast %21 : vector<128x1xf32> to vector<128x128xf32>
    %23 = arith.subf %17, %22 : vector<128x128xf32>
    %c0_17 = arith.constant 0 : index
    %c0_18 = arith.constant 0 : index
    %24 = vector.load %arg6[%c0_17, %c0_18] : memref<128x128xf32, #tpu.memory_space<vmem>>, vector<128x128xf32>
    tpu.vector_store %arg6[%c0_17, %c0_18], %23 {strides = array<i32>} : memref<128x128xf32, #tpu.memory_space<vmem>>, vector<128x128xf32>,
    return
  }
  func.func @transform_0(%arg0: i32) -> (i32, i32) {
    %c0_i32 = arith.constant 0 : i32
    %c0_i32_0 = arith.constant 0 : i32
    %c0_i32_1 = arith.constant 0 : i32
    return %c0_i32, %c0_i32_0 : i32, i32
  }
  func.func @transform_1(%arg0: i32) -> (i32, i32) {
    %c0_i32 = arith.constant 0 : i32
    %c0_i32_0 = arith.constant 0 : i32
    return %arg0, %c0_i32 : i32, i32
  }
  func.func @transform_2(%arg0: i32) -> (i32, i32) {
    %c0_i32 = arith.constant 0 : i32
    %c0_i32_0 = arith.constant 0 : i32
    %c0_i32_1 = arith.constant 0 : i32
    return %c0_i32, %c0_i32_0 : i32, i32
  }
  func.func @transform_3(%arg0: i32) -> (i32, i32) {
    %c0_i32 = arith.constant 0 : i32
    %c0_i32_0 = arith.constant 0 : i32
    %c0_i32_1 = arith.constant 0 : i32
    return %c0_i32, %c0_i32_0 : i32, i32
  }
  func.func @transform_4(%arg0: i32) -> (i32, i32) {
    %c0_i32 = arith.constant 0 : i32
    %c0_i32_0 = arith.constant 0 : i32
    %c0_i32_1 = arith.constant 0 : i32
    return %c0_i32, %c0_i32_0 : i32, i32
  }
  func.func @transform_5(%arg0: i32) -> (i32, i32) {
    %c0_i32 = arith.constant 0 : i32
    %c0_i32_0 = arith.constant 0 : i32
    return %arg0, %c0_i32 : i32, i32
  }
}

</mosaic_0001>

<llo_original>
// kernel: forward.1
$region0: #{forward.1}
  #allocation0 [shape = 'u32[]', space=smem, size = 0x4, offset = 0x4, fixed_abs, tag = 'smem constant byte address 0x4 - core index']
  #allocation1 [shape = 'u32[144,128]{1,0:T(1,128)}', space=vmem, size = 0x12000, scoped, tag = 'internal scratch']
  %s0 = inlined_call_operand.vmem [shape: f32[128,128], index: 0, kind: input, shape index: {}]
  %s1 = inlined_call_operand.vmem [shape: f32[128,8], index: 1, kind: input, shape index: {}]
  %s2 = inlined_call_operand.vmem [shape: f32[8,16], index: 2, kind: input, shape index: {}]
  %s3 = inlined_call_operand.vmem [shape: f32[16,128], index: 3, kind: input, shape index: {}]
  %s4 = inlined_call_operand.vmem [shape: f32[1,128], index: 4, kind: input, shape index: {}]
  %s5 = inlined_call_operand.vmem [shape: f32[128,128], index: 5, kind: output, shape index: {}]
  %s6 = sld [smem:[#allocation0]]
  $region30: #{forward.1} parent=0
    _
  %s8 = ssub.s32 1, %s6
  %s9 = scalar_select 0, %s8, %s6
  // Predicated region
  $region2: #{forward.1} parent=0 // pred_check
    _
  $region3: #{forward.1} parent=0 // pred_check_branch
    %11 = sbr.rel (0) target = $region5
  $region4: #{forward.1} parent=0 // pred_region
    _
  $region5: #{forward.1} parent=0 // pred_fallthru
    _
  // Predicated region
  $region6: #{forward.1} parent=0 // pred_check
    _
  $region7: #{forward.1} parent=0 // pred_check_branch
    %13 = sbr.rel (0) target = $region9
  $region8: #{forward.1} parent=0 // pred_region
    _
  $region9: #{forward.1} parent=0 // pred_fallthru
    _
  // Predicated region
  $region10: #{forward.1} parent=0 // pred_check
    _
  $region11: #{forward.1} parent=0 // pred_check_branch
    %15 = sbr.rel (0) target = $region13
  $region12: #{forward.1} parent=0 // pred_region
    _
  $region13: #{forward.1} parent=0 // pred_fallthru
    _
  // Predicated region
  $region14: #{forward.1} parent=0 // pred_check
    _
  $region15: #{forward.1} parent=0 // pred_check_branch
    %17 = sbr.rel (0) target = $region17
  $region16: #{forward.1} parent=0 // pred_region
    _
  $region17: #{forward.1} parent=0 // pred_fallthru
    _
  // Predicated region
  $region18: #{forward.1} parent=0 // pred_check
    _
  $region19: #{forward.1} parent=0 // pred_check_branch
    %19 = sbr.rel (0) target = $region21
  $region20: #{forward.1} parent=0 // pred_region
    _
  $region21: #{forward.1} parent=0 // pred_fallthru
    _
  %v20 = vld [vmem:[%s1] sm:$0xff]
  %v21 = vld [vmem:[%s1 + $0x8] sm:$0xff]
  %v22 = vld [vmem:[%s1 + $0x10] sm:$0xff]
  %v23 = vld [vmem:[%s1 + $0x18] sm:$0xff]
  %v24 = vld [vmem:[%s1 + $0x20] sm:$0xff]
  %v25 = vld [vmem:[%s1 + $0x28] sm:$0xff]
  %v26 = vld [vmem:[%s1 + $0x30] sm:$0xff]
  %v27 = vld [vmem:[%s1 + $0x38] sm:$0xff]
  %v28 = vld [vmem:[%s1 + $0x40] sm:$0xff]
  %v29 = vld [vmem:[%s1 + $0x48] sm:$0xff]
  %v30 = vld [vmem:[%s1 + $0x50] sm:$0xff]
  %v31 = vld [vmem:[%s1 + $0x58] sm:$0xff]
  %v32 = vld [vmem:[%s1 + $0x60] sm:$0xff]
  %v33 = vld [vmem:[%s1 + $0x68] sm:$0xff]
  %v34 = vld [vmem:[%s1 + $0x70] sm:$0xff]
  %v35 = vld [vmem:[%s1 + $0x78] sm:$0xff]
  %v36 = vld [vmem:[%s2] sm:$0xff]
  %vm37 = vcmask 64512
  %v39 = vsel %vm37, %v20, 0
  %v42 = vsel %vm37, %v21, 0
  %v45 = vsel %vm37, %v22, 0
  %v48 = vsel %vm37, %v23, 0
  %v51 = vsel %vm37, %v24, 0
  %v54 = vsel %vm37, %v25, 0
  %v57 = vsel %vm37, %v26, 0
  %v60 = vsel %vm37, %v27, 0
  %v63 = vsel %vm37, %v28, 0
  %v66 = vsel %vm37, %v29, 0
  %v69 = vsel %vm37, %v30, 0
  %v72 = vsel %vm37, %v31, 0
  %v75 = vsel %vm37, %v32, 0
  %v78 = vsel %vm37, %v33, 0
  %v81 = vsel %vm37, %v34, 0
  %v84 = vsel %vm37, %v35, 0
  %86 = vmatprep.subr.mxu0 0.0
  %87 = vmatpush1.msra.mxu0 %v36
  %88 = vmatprep.subr.mxu0 0.0
  %89 = vmatpush1.msra.mxu0 0.0
  %90 = vmatprep.subr.mxu0 0.0
  %91 = vmatpush1.msra.mxu0 0.0
  %92 = vmatprep.subr.mxu0 0.0
  %93 = vmatpush1.msra.mxu0 0.0
  %94 = vmatprep.subr.mxu0 0.0
  %95 = vmatpush1.msra.mxu0 0.0
  %96 = vmatprep.subr.mxu0 0.0
  %97 = vmatpush1.msra.mxu0 0.0
  %98 = vmatprep.subr.mxu0 0.0
  %99 = vmatpush1.msra.mxu0 0.0
  %100 = vmatprep.subr.mxu0 0.0
  %101 = vmatpush1.msra.mxu0 0.0
  %102 = vmatprep.subr.mxu0 0.0
  %103 = vmatpush1.msra.mxu0 0.0
  %104 = vmatprep.subr.mxu0 0.0
  %105 = vmatpush1.msra.mxu0 0.0
  %106 = vmatprep.subr.mxu0 0.0
  %107 = vmatpush1.msra.mxu0 0.0
  %108 = vmatprep.subr.mxu0 0.0
  %109 = vmatpush1.msra.mxu0 0.0
  %110 = vmatprep.subr.mxu0 0.0
  %111 = vmatpush1.msra.mxu0 0.0
  %112 = vmatprep.subr.mxu0 0.0
  %113 = vmatpush1.msra.mxu0 0.0
  %114 = vmatprep.subr.mxu0 0.0
  %115 = vmatpush1.msra.mxu0 0.0
  %116 = vmatprep.subr.mxu0 0.0
  %117 = vmatpush1.msra.mxu0 0.0
  %118 = vmatprep.subr.mxu0 0.0
  %119 = vmatpush1.msra.mxu0 0.0
  %120 = vmatprep.subr.mxu0 0.0
  %121 = vmatpush1.msra.mxu0 0.0
  %122 = vmatprep.subr.mxu0 0.0
  %123 = vmatpush1.msra.mxu0 0.0
  %124 = vmatprep.subr.mxu0 0.0
  %125 = vmatpush1.msra.mxu0 0.0
  %126 = vmatprep.subr.mxu0 0.0
  %127 = vmatpush1.msra.mxu0 0.0
  %128 = vmatprep.subr.mxu0 0.0
  %129 = vmatpush1.msra.mxu0 0.0
  %130 = vmatprep.subr.mxu0 0.0
  %131 = vmatpush1.msra.mxu0 0.0
  %132 = vmatprep.subr.mxu0 0.0
  %133 = vmatpush1.msra.mxu0 0.0
  %134 = vmatprep.subr.mxu0 0.0
  %135 = vmatpush1.msra.mxu0 0.0
  %136 = vmatprep.subr.mxu0 0.0
  %137 = vmatpush1.msra.mxu0 0.0
  %138 = vmatprep.subr.mxu0 0.0
  %139 = vmatpush1.msra.mxu0 0.0
  %140 = vmatprep.subr.mxu0 0.0
  %141 = vmatpush1.msra.mxu0 0.0
  %142 = vmatprep.subr.mxu0 0.0
  %143 = vmatpush1.msra.mxu0 0.0
  %144 = vmatprep.subr.mxu0 0.0
  %145 = vmatpush1.msra.mxu0 0.0
  %146 = vmatprep.subr.mxu0 0.0
  %147 = vmatpush1.msra.mxu0 0.0
  %148 = vmatprep.subr.mxu0 0.0
  %149 = vmatpush1.msra.mxu0 0.0
  %150 = vmatprep.mubr.f32.mxu0 0.0
  %151 = vmatmul.mubr.f32.gmra.mrb[0].mxu0 %v39
  %v152 = vpop.f32.mrb[0].mxu0
  %v153 = vadd.f32 0.0, %v152
  %v154 = vpop.f32.mrb[0].mxu0
  %155 = vmatprep.mubr.f32.mxu0 0.0
  %156 = vmatmul.mubr.f32.gmra.mrb[0].mxu0 %v42
  %v157 = vpop.f32.mrb[0].mxu0
  %v158 = vadd.f32 0.0, %v157
  %v159 = vpop.f32.mrb[0].mxu0
  %160 = vmatprep.mubr.f32.mxu0 0.0
  %161 = vmatmul.mubr.f32.gmra.mrb[0].mxu0 %v45
  %v162 = vpop.f32.mrb[0].mxu0
  %v163 = vadd.f32 0.0, %v162
  %v164 = vpop.f32.mrb[0].mxu0
  %165 = vmatprep.mubr.f32.mxu0 0.0
  %166 = vmatmul.mubr.f32.gmra.mrb[0].mxu0 %v48
  %v167 = vpop.f32.mrb[0].mxu0
  %v168 = vadd.f32 0.0, %v167
  %v169 = vpop.f32.mrb[0].mxu0
  %170 = vmatprep.mubr.f32.mxu0 0.0
  %171 = vmatmul.mubr.f32.gmra.mrb[0].mxu0 %v51
  %v172 = vpop.f32.mrb[0].mxu0
  %v173 = vadd.f32 0.0, %v172
  %v174 = vpop.f32.mrb[0].mxu0
  %175 = vmatprep.mubr.f32.mxu0 0.0
  %176 = vmatmul.mubr.f32.gmra.mrb[0].mxu0 %v54
  %v177 = vpop.f32.mrb[0].mxu0
  %v178 = vadd.f32 0.0, %v177
  %v179 = vpop.f32.mrb[0].mxu0
  %180 = vmatprep.mubr.f32.mxu0 0.0
  %181 = vmatmul.mubr.f32.gmra.mrb[0].mxu0 %v57
  %v182 = vpop.f32.mrb[0].mxu0
  %v183 = vadd.f32 0.0, %v182
  %v184 = vpop.f32.mrb[0].mxu0
  %185 = vmatprep.mubr.f32.mxu0 0.0
  %186 = vmatmul.mubr.f32.gmra.mrb[0].mxu0 %v60
  %v187 = vpop.f32.mrb[0].mxu0
  %v188 = vadd.f32 0.0, %v187
  %v189 = vpop.f32.mrb[0].mxu0
  %190 = vmatprep.mubr.f32.mxu0 0.0
  %191 = vmatmul.mubr.f32.gmra.mrb[0].mxu0 %v63
  %v192 = vpop.f32.mrb[0].mxu0
  %v193 = vadd.f32 0.0, %v192
  %v194 = vpop.f32.mrb[0].mxu0
  %195 = vmatprep.mubr.f32.mxu0 0.0
  %196 = vmatmul.mubr.f32.gmra.mrb[0].mxu0 %v66
  %v197 = vpop.f32.mrb[0].mxu0
  %v198 = vadd.f32 0.0, %v197
  %v199 = vpop.f32.mrb[0].mxu0
  %200 = vmatprep.mubr.f32.mxu0 0.0
  %201 = vmatmul.mubr.f32.gmra.mrb[0].mxu0 %v69
  %v202 = vpop.f32.mrb[0].mxu0
  %v203 = vadd.f32 0.0, %v202
  %v204 = vpop.f32.mrb[0].mxu0
  %205 = vmatprep.mubr.f32.mxu0 0.0
  %206 = vmatmul.mubr.f32.gmra.mrb[0].mxu0 %v72
  %v207 = vpop.f32.mrb[0].mxu0
  %v208 = vadd.f32 0.0, %v207
  %v209 = vpop.f32.mrb[0].mxu0
  %210 = vmatprep.mubr.f32.mxu0 0.0
  %211 = vmatmul.mubr.f32.gmra.mrb[0].mxu0 %v75
  %v212 = vpop.f32.mrb[0].mxu0
  %v213 = vadd.f32 0.0, %v212
  %v214 = vpop.f32.mrb[0].mxu0
  %215 = vmatprep.mubr.f32.mxu0 0.0
  %216 = vmatmul.mubr.f32.gmra.mrb[0].mxu0 %v78
  %v217 = vpop.f32.mrb[0].mxu0
  %v218 = vadd.f32 0.0, %v217
  %v219 = vpop.f32.mrb[0].mxu0
  %220 = vmatprep.mubr.f32.mxu0 0.0
  %221 = vmatmul.mubr.f32.gmra.mrb[0].mxu0 %v81
  %v222 = vpop.f32.mrb[0].mxu0
  %v223 = vadd.f32 0.0, %v222
  %v224 = vpop.f32.mrb[0].mxu0
  %225 = vmatprep.mubr.f32.mxu0 0.0
  %226 = vmatmul.mubr.f32.gmra.mrb[0].mxu0 %v84
  %v227 = vpop.f32.mrb[0].mxu0
  %v228 = vadd.f32 0.0, %v227
  %v229 = vpop.f32.mrb[0].mxu0
  %230 = vdwg.mxu0
  %v231 = vld [vmem:[%s0] sm:$0xff]
  %v232 = vld [vmem:[%s0 + $0x8] sm:$0xff]
  %v233 = vld [vmem:[%s0 + $0x10] sm:$0xff]
  %v234 = vld [vmem:[%s0 + $0x18] sm:$0xff]
  %v235 = vld [vmem:[%s0 + $0x20] sm:$0xff]
  %v236 = vld [vmem:[%s0 + $0x28] sm:$0xff]
  %v237 = vld [vmem:[%s0 + $0x30] sm:$0xff]
  %v238 = vld [vmem:[%s0 + $0x38] sm:$0xff]
  %v239 = vld [vmem:[%s0 + $0x40] sm:$0xff]
  %v240 = vld [vmem:[%s0 + $0x48] sm:$0xff]
  %v241 = vld [vmem:[%s0 + $0x50] sm:$0xff]
  %v242 = vld [vmem:[%s0 + $0x58] sm:$0xff]
  %v243 = vld [vmem:[%s0 + $0x60] sm:$0xff]
  %v244 = vld [vmem:[%s0 + $0x68] sm:$0xff]
  %v245 = vld [vmem:[%s0 + $0x70] sm:$0xff]
  %v246 = vld [vmem:[%s0 + $0x78] sm:$0xff]
  %247 = vmatprep.subr.mxu0 0.0
  %248 = vmatpush1.msra.mxu0 %v153
  %249 = vmatprep.subr.mxu0 0.0
  %250 = vmatpush1.msra.mxu0 %v158
  %251 = vmatprep.subr.mxu0 0.0
  %252 = vmatpush1.msra.mxu0 %v163
  %253 = vmatprep.subr.mxu0 0.0
  %254 = vmatpush1.msra.mxu0 %v168
  %255 = vmatprep.subr.mxu0 0.0
  %256 = vmatpush1.msra.mxu0 %v173
  %257 = vmatprep.subr.mxu0 0.0
  %258 = vmatpush1.msra.mxu0 %v178
  %259 = vmatprep.subr.mxu0 0.0
  %260 = vmatpush1.msra.mxu0 %v183
  %261 = vmatprep.subr.mxu0 0.0
  %262 = vmatpush1.msra.mxu0 %v188
  %263 = vmatprep.subr.mxu0 0.0
  %264 = vmatpush1.msra.mxu0 %v193
  %265 = vmatprep.subr.mxu0 0.0
  %266 = vmatpush1.msra.mxu0 %v198
  %267 = vmatprep.subr.mxu0 0.0
  %268 = vmatpush1.msra.mxu0 %v203
  %269 = vmatprep.subr.mxu0 0.0
  %270 = vmatpush1.msra.mxu0 %v208
  %271 = vmatprep.subr.mxu0 0.0
  %272 = vmatpush1.msra.mxu0 %v213
  %273 = vmatprep.subr.mxu0 0.0
  %274 = vmatpush1.msra.mxu0 %v218
  %275 = vmatprep.subr.mxu0 0.0
  %276 = vmatpush1.msra.mxu0 %v223
  %277 = vmatprep.subr.mxu0 0.0
  %278 = vmatpush1.msra.mxu0 %v228
  %279 = vmatprep.subr.mxu0 0.0
  %280 = vmatpush1.msra.mxu0 0.0
  %281 = vmatprep.subr.mxu0 0.0
  %282 = vmatpush1.msra.mxu0 0.0
  %283 = vmatprep.subr.mxu0 0.0
  %284 = vmatpush1.msra.mxu0 0.0
  %285 = vmatprep.subr.mxu0 0.0
  %286 = vmatpush1.msra.mxu0 0.0
  %287 = vmatprep.subr.mxu0 0.0
  %288 = vmatpush1.msra.mxu0 0.0
  %289 = vmatprep.subr.mxu0 0.0
  %290 = vmatpush1.msra.mxu0 0.0
  %291 = vmatprep.subr.mxu0 0.0
  %292 = vmatpush1.msra.mxu0 0.0
  %293 = vmatprep.subr.mxu0 0.0
  %294 = vmatpush1.msra.mxu0 0.0
  %295 = vmatprep.subr.mxu0 0.0
  %296 = vmatpush1.msra.mxu0 0.0
  %297 = vmatprep.subr.mxu0 0.0
  %298 = vmatpush1.msra.mxu0 0.0
  %299 = vmatprep.subr.mxu0 0.0
  %300 = vmatpush1.msra.mxu0 0.0
  %301 = vmatprep.subr.mxu0 0.0
  %302 = vmatpush1.msra.mxu0 0.0
  %303 = vmatprep.subr.mxu0 0.0
  %304 = vmatpush1.msra.mxu0 0.0
  %305 = vmatprep.subr.mxu0 0.0
  %306 = vmatpush1.msra.mxu0 0.0
  %307 = vmatprep.subr.mxu0 0.0
  %308 = vmatpush1.msra.mxu0 0.0
  %309 = vmatprep.subr.mxu0 0.0
  %310 = vmatpush1.msra.mxu0 0.0
  %311 = vmatprep.mubr.f32.mxu0 0.0
  %312 = vmatmul.mubr.f32.gmra.mrb[0].mxu0 %v231
  %v313 = vpop.f32.mrb[0].mxu0
  %v314 = vadd.f32 0.0, %v313
  %v315 = vpop.f32.mrb[0].mxu0
  %316 = vmatprep.mubr.f32.mxu0 0.0
  %317 = vmatmul.mubr.f32.gmra.mrb[0].mxu0 %v232
  %v318 = vpop.f32.mrb[0].mxu0
  %v319 = vadd.f32 0.0, %v318
  %v320 = vpop.f32.mrb[0].mxu0
  %321 = vmatprep.mubr.f32.mxu0 0.0
  %322 = vmatmul.mubr.f32.gmra.mrb[0].mxu0 %v233
  %v323 = vpop.f32.mrb[0].mxu0
  %v324 = vadd.f32 0.0, %v323
  %v325 = vpop.f32.mrb[0].mxu0
  %326 = vmatprep.mubr.f32.mxu0 0.0
  %327 = vmatmul.mubr.f32.gmra.mrb[0].mxu0 %v234
  %v328 = vpop.f32.mrb[0].mxu0
  %v329 = vadd.f32 0.0, %v328
  %v330 = vpop.f32.mrb[0].mxu0
  %331 = vmatprep.mubr.f32.mxu0 0.0
  %332 = vmatmul.mubr.f32.gmra.mrb[0].mxu0 %v235
  %v333 = vpop.f32.mrb[0].mxu0
  %v334 = vadd.f32 0.0, %v333
  %v335 = vpop.f32.mrb[0].mxu0
  %336 = vmatprep.mubr.f32.mxu0 0.0
  %337 = vmatmul.mubr.f32.gmra.mrb[0].mxu0 %v236
  %v338 = vpop.f32.mrb[0].mxu0
  %v339 = vadd.f32 0.0, %v338
  %v340 = vpop.f32.mrb[0].mxu0
  %341 = vmatprep.mubr.f32.mxu0 0.0
  %342 = vmatmul.mubr.f32.gmra.mrb[0].mxu0 %v237
  %v343 = vpop.f32.mrb[0].mxu0
  %v344 = vadd.f32 0.0, %v343
  %v345 = vpop.f32.mrb[0].mxu0
  %346 = vmatprep.mubr.f32.mxu0 0.0
  %347 = vmatmul.mubr.f32.gmra.mrb[0].mxu0 %v238
  %v348 = vpop.f32.mrb[0].mxu0
  %v349 = vadd.f32 0.0, %v348
  %v350 = vpop.f32.mrb[0].mxu0
  %351 = vmatprep.mubr.f32.mxu0 0.0
  %352 = vmatmul.mubr.f32.gmra.mrb[0].mxu0 %v239
  %v353 = vpop.f32.mrb[0].mxu0
  %v354 = vadd.f32 0.0, %v353
  %v355 = vpop.f32.mrb[0].mxu0
  %356 = vmatprep.mubr.f32.mxu0 0.0
  %357 = vmatmul.mubr.f32.gmra.mrb[0].mxu0 %v240
  %v358 = vpop.f32.mrb[0].mxu0
  %v359 = vadd.f32 0.0, %v358
  %v360 = vpop.f32.mrb[0].mxu0
  %361 = vmatprep.mubr.f32.mxu0 0.0
  %362 = vmatmul.mubr.f32.gmra.mrb[0].mxu0 %v241
  %v363 = vpop.f32.mrb[0].mxu0
  %v364 = vadd.f32 0.0, %v363
  %v365 = vpop.f32.mrb[0].mxu0
  %366 = vmatprep.mubr.f32.mxu0 0.0
  %367 = vmatmul.mubr.f32.gmra.mrb[0].mxu0 %v242
  %v368 = vpop.f32.mrb[0].mxu0
  %v369 = vadd.f32 0.0, %v368
  %v370 = vpop.f32.mrb[0].mxu0
  %371 = vmatprep.mubr.f32.mxu0 0.0
  %372 = vmatmul.mubr.f32.gmra.mrb[0].mxu0 %v243
  %v373 = vpop.f32.mrb[0].mxu0
  %v374 = vadd.f32 0.0, %v373
  %v375 = vpop.f32.mrb[0].mxu0
  %376 = vmatprep.mubr.f32.mxu0 0.0
  %377 = vmatmul.mubr.f32.gmra.mrb[0].mxu0 %v244
  %v378 = vpop.f32.mrb[0].mxu0
  %v379 = vadd.f32 0.0, %v378
  %v380 = vpop.f32.mrb[0].mxu0
  %381 = vmatprep.mubr.f32.mxu0 0.0
  %382 = vmatmul.mubr.f32.gmra.mrb[0].mxu0 %v245
  %v383 = vpop.f32.mrb[0].mxu0
  %v384 = vadd.f32 0.0, %v383
  %v385 = vpop.f32.mrb[0].mxu0
  %386 = vmatprep.mubr.f32.mxu0 0.0
  %387 = vmatmul.mubr.f32.gmra.mrb[0].mxu0 %v246
  %v388 = vpop.f32.mrb[0].mxu0
  %v389 = vadd.f32 0.0, %v388
  %v390 = vpop.f32.mrb[0].mxu0
  %391 = vdwg.mxu0
  %v392 = vmax.f32 %v314, 0.0
  %v393 = vmax.f32 %v319, 0.0
  %v394 = vmax.f32 %v324, 0.0
  %v395 = vmax.f32 %v329, 0.0
  %v396 = vmax.f32 %v334, 0.0
  %v397 = vmax.f32 %v339, 0.0
  %v398 = vmax.f32 %v344, 0.0
  %v399 = vmax.f32 %v349, 0.0
  %v400 = vmax.f32 %v354, 0.0
  %v401 = vmax.f32 %v359, 0.0
  %v402 = vmax.f32 %v364, 0.0
  %v403 = vmax.f32 %v369, 0.0
  %v404 = vmax.f32 %v374, 0.0
  %v405 = vmax.f32 %v379, 0.0
  %v406 = vmax.f32 %v384, 0.0
  %v407 = vmax.f32 %v389, 0.0
  %v408 = vld [vmem:[%s3] sm:$0xff]
  %v409 = vld [vmem:[%s3 + $0x8] sm:$0xff]
  %vm410 = vcmask 130048
  %v412 = vsel %vm410, %v392, 0
  %v415 = vsel %vm410, %v393, 0
  %v418 = vsel %vm410, %v394, 0
  %v421 = vsel %vm410, %v395, 0
  %v424 = vsel %vm410, %v396, 0
  %v427 = vsel %vm410, %v397, 0
  %v430 = vsel %vm410, %v398, 0
  %v433 = vsel %vm410, %v399, 0
  %v436 = vsel %vm410, %v400, 0
  %v439 = vsel %vm410, %v401, 0
  %v442 = vsel %vm410, %v402, 0
  %v445 = vsel %vm410, %v403, 0
  %v448 = vsel %vm410, %v404, 0
  %v451 = vsel %vm410, %v405, 0
  %v454 = vsel %vm410, %v406, 0
  %v457 = vsel %vm410, %v407, 0
  %459 = vmatprep.subr.mxu0 0.0
  %460 = vmatpush1.msra.mxu0 %v408
  %461 = vmatprep.subr.mxu0 0.0
  %462 = vmatpush1.msra.mxu0 %v409
  %463 = vmatprep.subr.mxu0 0.0
  %464 = vmatpush1.msra.mxu0 0.0
  %465 = vmatprep.subr.mxu0 0.0
  %466 = vmatpush1.msra.mxu0 0.0
  %467 = vmatprep.subr.mxu0 0.0
  %468 = vmatpush1.msra.mxu0 0.0
  %469 = vmatprep.subr.mxu0 0.0
  %470 = vmatpush1.msra.mxu0 0.0
  %471 = vmatprep.subr.mxu0 0.0
  %472 = vmatpush1.msra.mxu0 0.0
  %473 = vmatprep.subr.mxu0 0.0
  %474 = vmatpush1.msra.mxu0 0.0
  %475 = vmatprep.subr.mxu0 0.0
  %476 = vmatpush1.msra.mxu0 0.0
  %477 = vmatprep.subr.mxu0 0.0
  %478 = vmatpush1.msra.mxu0 0.0
  %479 = vmatprep.subr.mxu0 0.0
  %480 = vmatpush1.msra.mxu0 0.0
  %481 = vmatprep.subr.mxu0 0.0
  %482 = vmatpush1.msra.mxu0 0.0
  %483 = vmatprep.subr.mxu0 0.0
  %484 = vmatpush1.msra.mxu0 0.0
  %485 = vmatprep.subr.mxu0 0.0
  %486 = vmatpush1.msra.mxu0 0.0
  %487 = vmatprep.subr.mxu0 0.0
  %488 = vmatpush1.msra.mxu0 0.0
  %489 = vmatprep.subr.mxu0 0.0
  %490 = vmatpush1.msra.mxu0 0.0
  %491 = vmatprep.subr.mxu0 0.0
  %492 = vmatpush1.msra.mxu0 0.0
  %493 = vmatprep.subr.mxu0 0.0
  %494 = vmatpush1.msra.mxu0 0.0
  %495 = vmatprep.subr.mxu0 0.0
  %496 = vmatpush1.msra.mxu0 0.0
  %497 = vmatprep.subr.mxu0 0.0
  %498 = vmatpush1.msra.mxu0 0.0
  %499 = vmatprep.subr.mxu0 0.0
  %500 = vmatpush1.msra.mxu0 0.0
  %501 = vmatprep.subr.mxu0 0.0
  %502 = vmatpush1.msra.mxu0 0.0
  %503 = vmatprep.subr.mxu0 0.0
  %504 = vmatpush1.msra.mxu0 0.0
  %505 = vmatprep.subr.mxu0 0.0
  %506 = vmatpush1.msra.mxu0 0.0
  %507 = vmatprep.subr.mxu0 0.0
  %508 = vmatpush1.msra.mxu0 0.0
  %509 = vmatprep.subr.mxu0 0.0
  %510 = vmatpush1.msra.mxu0 0.0
  %511 = vmatprep.subr.mxu0 0.0
  %512 = vmatpush1.msra.mxu0 0.0
  %513 = vmatprep.subr.mxu0 0.0
  %514 = vmatpush1.msra.mxu0 0.0
  %515 = vmatprep.subr.mxu0 0.0
  %516 = vmatpush1.msra.mxu0 0.0
  %517 = vmatprep.subr.mxu0 0.0
  %518 = vmatpush1.msra.mxu0 0.0
  %519 = vmatprep.subr.mxu0 0.0
  %520 = vmatpush1.msra.mxu0 0.0
  %521 = vmatprep.subr.mxu0 0.0
  %522 = vmatpush1.msra.mxu0 0.0
  %523 = vmatprep.mubr.f32.mxu0 0.0
  %524 = vmatmul.mubr.f32.gmra.mrb[0].mxu0 %v412
  %v525 = vpop.f32.mrb[0].mxu0
  %v526 = vadd.f32 0.0, %v525
  %v527 = vpop.f32.mrb[0].mxu0
  %528 = vmatprep.mubr.f32.mxu0 0.0
  %529 = vmatmul.mubr.f32.gmra.mrb[0].mxu0 %v415
  %v530 = vpop.f32.mrb[0].mxu0
  %v531 = vadd.f32 0.0, %v530
  %v532 = vpop.f32.mrb[0].mxu0
  %533 = vmatprep.mubr.f32.mxu0 0.0
  %534 = vmatmul.mubr.f32.gmra.mrb[0].mxu0 %v418
  %v535 = vpop.f32.mrb[0].mxu0
  %v536 = vadd.f32 0.0, %v535
  %v537 = vpop.f32.mrb[0].mxu0
  %538 = vmatprep.mubr.f32.mxu0 0.0
  %539 = vmatmul.mubr.f32.gmra.mrb[0].mxu0 %v421
  %v540 = vpop.f32.mrb[0].mxu0
  %v541 = vadd.f32 0.0, %v540
  %v542 = vpop.f32.mrb[0].mxu0
  %543 = vmatprep.mubr.f32.mxu0 0.0
  %544 = vmatmul.mubr.f32.gmra.mrb[0].mxu0 %v424
  %v545 = vpop.f32.mrb[0].mxu0
  %v546 = vadd.f32 0.0, %v545
  %v547 = vpop.f32.mrb[0].mxu0
  %548 = vmatprep.mubr.f32.mxu0 0.0
  %549 = vmatmul.mubr.f32.gmra.mrb[0].mxu0 %v427
  %v550 = vpop.f32.mrb[0].mxu0
  %v551 = vadd.f32 0.0, %v550
  %v552 = vpop.f32.mrb[0].mxu0
  %553 = vmatprep.mubr.f32.mxu0 0.0
  %554 = vmatmul.mubr.f32.gmra.mrb[0].mxu0 %v430
  %v555 = vpop.f32.mrb[0].mxu0
  %v556 = vadd.f32 0.0, %v555
  %v557 = vpop.f32.mrb[0].mxu0
  %558 = vmatprep.mubr.f32.mxu0 0.0
  %559 = vmatmul.mubr.f32.gmra.mrb[0].mxu0 %v433
  %v560 = vpop.f32.mrb[0].mxu0
  %v561 = vadd.f32 0.0, %v560
  %v562 = vpop.f32.mrb[0].mxu0
  %563 = vmatprep.mubr.f32.mxu0 0.0
  %564 = vmatmul.mubr.f32.gmra.mrb[0].mxu0 %v436
  %v565 = vpop.f32.mrb[0].mxu0
  %v566 = vadd.f32 0.0, %v565
  %v567 = vpop.f32.mrb[0].mxu0
  %568 = vmatprep.mubr.f32.mxu0 0.0
  %569 = vmatmul.mubr.f32.gmra.mrb[0].mxu0 %v439
  %v570 = vpop.f32.mrb[0].mxu0
  %v571 = vadd.f32 0.0, %v570
  %v572 = vpop.f32.mrb[0].mxu0
  %573 = vmatprep.mubr.f32.mxu0 0.0
  %574 = vmatmul.mubr.f32.gmra.mrb[0].mxu0 %v442
  %v575 = vpop.f32.mrb[0].mxu0
  %v576 = vadd.f32 0.0, %v575
  %v577 = vpop.f32.mrb[0].mxu0
  %578 = vmatprep.mubr.f32.mxu0 0.0
  %579 = vmatmul.mubr.f32.gmra.mrb[0].mxu0 %v445
  %v580 = vpop.f32.mrb[0].mxu0
  %v581 = vadd.f32 0.0, %v580
  %v582 = vpop.f32.mrb[0].mxu0
  %583 = vmatprep.mubr.f32.mxu0 0.0
  %584 = vmatmul.mubr.f32.gmra.mrb[0].mxu0 %v448
  %v585 = vpop.f32.mrb[0].mxu0
  %v586 = vadd.f32 0.0, %v585
  %v587 = vpop.f32.mrb[0].mxu0
  %588 = vmatprep.mubr.f32.mxu0 0.0
  %589 = vmatmul.mubr.f32.gmra.mrb[0].mxu0 %v451
  %v590 = vpop.f32.mrb[0].mxu0
  %v591 = vadd.f32 0.0, %v590
  %v592 = vpop.f32.mrb[0].mxu0
  %593 = vmatprep.mubr.f32.mxu0 0.0
  %594 = vmatmul.mubr.f32.gmra.mrb[0].mxu0 %v454
  %v595 = vpop.f32.mrb[0].mxu0
  %v596 = vadd.f32 0.0, %v595
  %v597 = vpop.f32.mrb[0].mxu0
  %598 = vmatprep.mubr.f32.mxu0 0.0
  %599 = vmatmul.mubr.f32.gmra.mrb[0].mxu0 %v457
  %v600 = vpop.f32.mrb[0].mxu0
  %v601 = vadd.f32 0.0, %v600
  %v602 = vpop.f32.mrb[0].mxu0
  %603 = vdwg.mxu0
  %v604 = vld [vmem:[%s4] sm:$0x1]
  %v606 = vlaneseq
  %v607 = vshrl.u32 %v606, 7
  %v608 = vsub.s32 0, %v607
  %v609 = vrot.slane %v604, %v608
  %611 = vmatprep.subr.mxu0 0.0
  %612 = vmatpush1.msra.mxu0 %v526
  %613 = vmatprep.subr.mxu0 0.0
  %614 = vmatpush1.msra.mxu0 %v531
  %615 = vmatprep.subr.mxu0 0.0
  %616 = vmatpush1.msra.mxu0 %v536
  %617 = vmatprep.subr.mxu0 0.0
  %618 = vmatpush1.msra.mxu0 %v541
  %619 = vmatprep.subr.mxu0 0.0
  %620 = vmatpush1.msra.mxu0 %v546
  %621 = vmatprep.subr.mxu0 0.0
  %622 = vmatpush1.msra.mxu0 %v551
  %623 = vmatprep.subr.mxu0 0.0
  %624 = vmatpush1.msra.mxu0 %v556
  %625 = vmatprep.subr.mxu0 0.0
  %626 = vmatpush1.msra.mxu0 %v561
  %627 = vmatprep.subr.mxu0 0.0
  %628 = vmatpush1.msra.mxu0 %v566
  %629 = vmatprep.subr.mxu0 0.0
  %630 = vmatpush1.msra.mxu0 %v571
  %631 = vmatprep.subr.mxu0 0.0
  %632 = vmatpush1.msra.mxu0 %v576
  %633 = vmatprep.subr.mxu0 0.0
  %634 = vmatpush1.msra.mxu0 %v581
  %635 = vmatprep.subr.mxu0 0.0
  %636 = vmatpush1.msra.mxu0 %v586
  %637 = vmatprep.subr.mxu0 0.0
  %638 = vmatpush1.msra.mxu0 %v591
  %639 = vmatprep.subr.mxu0 0.0
  %640 = vmatpush1.msra.mxu0 %v596
  %641 = vmatprep.subr.mxu0 0.0
  %642 = vmatpush1.msra.mxu0 %v601
  %643 = vmatprep.subr.mxu0 0.0
  %644 = vmatpush1.msra.mxu0 0.0
  %645 = vmatprep.subr.mxu0 0.0
  %646 = vmatpush1.msra.mxu0 0.0
  %647 = vmatprep.subr.mxu0 0.0
  %648 = vmatpush1.msra.mxu0 0.0
  %649 = vmatprep.subr.mxu0 0.0
  %650 = vmatpush1.msra.mxu0 0.0
  %651 = vmatprep.subr.mxu0 0.0
  %652 = vmatpush1.msra.mxu0 0.0
  %653 = vmatprep.subr.mxu0 0.0
  %654 = vmatpush1.msra.mxu0 0.0
  %655 = vmatprep.subr.mxu0 0.0
  %656 = vmatpush1.msra.mxu0 0.0
  %657 = vmatprep.subr.mxu0 0.0
  %658 = vmatpush1.msra.mxu0 0.0
  %659 = vmatprep.subr.mxu0 0.0
  %660 = vmatpush1.msra.mxu0 0.0
  %661 = vmatprep.subr.mxu0 0.0
  %662 = vmatpush1.msra.mxu0 0.0
  %663 = vmatprep.subr.mxu0 0.0
  %664 = vmatpush1.msra.mxu0 0.0
  %665 = vmatprep.subr.mxu0 0.0
  %666 = vmatpush1.msra.mxu0 0.0
  %667 = vmatprep.subr.mxu0 0.0
  %668 = vmatpush1.msra.mxu0 0.0
  %669 = vmatprep.subr.mxu0 0.0
  %670 = vmatpush1.msra.mxu0 0.0
  %671 = vmatprep.subr.mxu0 0.0
  %672 = vmatpush1.msra.mxu0 0.0
  %673 = vmatprep.subr.mxu0 0.0
  %674 = vmatpush1.msra.mxu0 0.0
  %675 = vmatprep.mubr.f32.mxu0 0.0
  %676 = vmatmul.mubr.f32.gmra.mrb[0].mxu0 %v231
  %v677 = vpop.f32.mrb[0].mxu0
  %v678 = vadd.f32 %v609, %v677
  %v679 = vpop.f32.mrb[0].mxu0
  %680 = vmatprep.mubr.f32.mxu0 0.0
  %681 = vmatmul.mubr.f32.gmra.mrb[0].mxu0 %v232
  %v682 = vpop.f32.mrb[0].mxu0
  %v683 = vadd.f32 %v609, %v682
  %v684 = vpop.f32.mrb[0].mxu0
  %685 = vmatprep.mubr.f32.mxu0 0.0
  %686 = vmatmul.mubr.f32.gmra.mrb[0].mxu0 %v233
  %v687 = vpop.f32.mrb[0].mxu0
  %v688 = vadd.f32 %v609, %v687
  %v689 = vpop.f32.mrb[0].mxu0
  %690 = vmatprep.mubr.f32.mxu0 0.0
  %691 = vmatmul.mubr.f32.gmra.mrb[0].mxu0 %v234
  %v692 = vpop.f32.mrb[0].mxu0
  %v693 = vadd.f32 %v609, %v692
  %v694 = vpop.f32.mrb[0].mxu0
  %695 = vmatprep.mubr.f32.mxu0 0.0
  %696 = vmatmul.mubr.f32.gmra.mrb[0].mxu0 %v235
  %v697 = vpop.f32.mrb[0].mxu0
  %v698 = vadd.f32 %v609, %v697
  %v699 = vpop.f32.mrb[0].mxu0
  %700 = vmatprep.mubr.f32.mxu0 0.0
  %701 = vmatmul.mubr.f32.gmra.mrb[0].mxu0 %v236
  %v702 = vpop.f32.mrb[0].mxu0
  %v703 = vadd.f32 %v609, %v702
  %v704 = vpop.f32.mrb[0].mxu0
  %705 = vmatprep.mubr.f32.mxu0 0.0
  %706 = vmatmul.mubr.f32.gmra.mrb[0].mxu0 %v237
  %v707 = vpop.f32.mrb[0].mxu0
  %v708 = vadd.f32 %v609, %v707
  %v709 = vpop.f32.mrb[0].mxu0
  %710 = vmatprep.mubr.f32.mxu0 0.0
  %711 = vmatmul.mubr.f32.gmra.mrb[0].mxu0 %v238
  %v712 = vpop.f32.mrb[0].mxu0
  %v713 = vadd.f32 %v609, %v712
  %v714 = vpop.f32.mrb[0].mxu0
  %715 = vmatprep.mubr.f32.mxu0 0.0
  %716 = vmatmul.mubr.f32.gmra.mrb[0].mxu0 %v239
  %v717 = vpop.f32.mrb[0].mxu0
  %v718 = vadd.f32 %v609, %v717
  %v719 = vpop.f32.mrb[0].mxu0
  %720 = vmatprep.mubr.f32.mxu0 0.0
  %721 = vmatmul.mubr.f32.gmra.mrb[0].mxu0 %v240
  %v722 = vpop.f32.mrb[0].mxu0
  %v723 = vadd.f32 %v609, %v722
  %v724 = vpop.f32.mrb[0].mxu0
  %725 = vmatprep.mubr.f32.mxu0 0.0
  %726 = vmatmul.mubr.f32.gmra.mrb[0].mxu0 %v241
  %v727 = vpop.f32.mrb[0].mxu0
  %v728 = vadd.f32 %v609, %v727
  %v729 = vpop.f32.mrb[0].mxu0
  %730 = vmatprep.mubr.f32.mxu0 0.0
  %731 = vmatmul.mubr.f32.gmra.mrb[0].mxu0 %v242
  %v732 = vpop.f32.mrb[0].mxu0
  %v733 = vadd.f32 %v609, %v732
  %v734 = vpop.f32.mrb[0].mxu0
  %735 = vmatprep.mubr.f32.mxu0 0.0
  %736 = vmatmul.mubr.f32.gmra.mrb[0].mxu0 %v243
  %v737 = vpop.f32.mrb[0].mxu0
  %v738 = vadd.f32 %v609, %v737
  %v739 = vpop.f32.mrb[0].mxu0
  %740 = vmatprep.mubr.f32.mxu0 0.0
  %741 = vmatmul.mubr.f32.gmra.mrb[0].mxu0 %v244
  %v742 = vpop.f32.mrb[0].mxu0
  %v743 = vadd.f32 %v609, %v742
  %v744 = vpop.f32.mrb[0].mxu0
  %745 = vmatprep.mubr.f32.mxu0 0.0
  %746 = vmatmul.mubr.f32.gmra.mrb[0].mxu0 %v245
  %v747 = vpop.f32.mrb[0].mxu0
  %v748 = vadd.f32 %v609, %v747
  %v749 = vpop.f32.mrb[0].mxu0
  %750 = vmatprep.mubr.f32.mxu0 0.0
  %751 = vmatmul.mubr.f32.gmra.mrb[0].mxu0 %v246
  %v752 = vpop.f32.mrb[0].mxu0
  %v753 = vadd.f32 %v609, %v752
  %v754 = vpop.f32.mrb[0].mxu0
  %755 = vdwg.mxu0
  %756 = vmax.xlane.f32.xlu0 %v678
  %v757 = vpop.xlane.xlu0 %756
  %758 = vmax.xlane.f32.xlu0 %v683
  %v759 = vpop.xlane.xlu0 %758
  %760 = vmax.xlane.f32.xlu0 %v688
  %v761 = vpop.xlane.xlu0 %760
  %762 = vmax.xlane.f32.xlu0 %v693
  %v763 = vpop.xlane.xlu0 %762
  %764 = vmax.xlane.f32.xlu0 %v698
  %v765 = vpop.xlane.xlu0 %764
  %766 = vmax.xlane.f32.xlu0 %v703
  %v767 = vpop.xlane.xlu0 %766
  %768 = vmax.xlane.f32.xlu0 %v708
  %v769 = vpop.xlane.xlu0 %768
  %770 = vmax.xlane.f32.xlu0 %v713
  %v771 = vpop.xlane.xlu0 %770
  %772 = vmax.xlane.f32.xlu0 %v718
  %v773 = vpop.xlane.xlu0 %772
  %774 = vmax.xlane.f32.xlu0 %v723
  %v775 = vpop.xlane.xlu0 %774
  %776 = vmax.xlane.f32.xlu0 %v728
  %v777 = vpop.xlane.xlu0 %776
  %778 = vmax.xlane.f32.xlu0 %v733
  %v779 = vpop.xlane.xlu0 %778
  %780 = vmax.xlane.f32.xlu0 %v738
  %v781 = vpop.xlane.xlu0 %780
  %782 = vmax.xlane.f32.xlu0 %v743
  %v783 = vpop.xlane.xlu0 %782
  %784 = vmax.xlane.f32.xlu0 %v748
  %v785 = vpop.xlane.xlu0 %784
  %786 = vmax.xlane.f32.xlu0 %v753
  %v787 = vpop.xlane.xlu0 %786
  %v788 = vsub.f32 %v678, %v757
  %v789 = vsub.f32 %v683, %v759
  %v790 = vsub.f32 %v688, %v761
  %v791 = vsub.f32 %v693, %v763
  %v792 = vsub.f32 %v698, %v765
  %v793 = vsub.f32 %v703, %v767
  %v794 = vsub.f32 %v708, %v769
  %v795 = vsub.f32 %v713, %v771
  %v796 = vsub.f32 %v718, %v773
  %v797 = vsub.f32 %v723, %v775
  %v798 = vsub.f32 %v728, %v777
  %v799 = vsub.f32 %v733, %v779
  %v800 = vsub.f32 %v738, %v781
  %v801 = vsub.f32 %v743, %v783
  %v802 = vsub.f32 %v748, %v785
  %v803 = vsub.f32 %v753, %v787
  %v804 = vmul.f32 %v788, 1.442695
  %v805 = vpow.pop %v804
  %v806 = vmul.f32 %v789, 1.442695
  %v807 = vpow.pop %v806
  %v808 = vmul.f32 %v790, 1.442695
  %v809 = vpow.pop %v808
  %v810 = vmul.f32 %v791, 1.442695
  %v811 = vpow.pop %v810
  %v812 = vmul.f32 %v792, 1.442695
  %v813 = vpow.pop %v812
  %v814 = vmul.f32 %v793, 1.442695
  %v815 = vpow.pop %v814
  %v816 = vmul.f32 %v794, 1.442695
  %v817 = vpow.pop %v816
  %v818 = vmul.f32 %v795, 1.442695
  %v819 = vpow.pop %v818
  %v820 = vmul.f32 %v796, 1.442695
  %v821 = vpow.pop %v820
  %v822 = vmul.f32 %v797, 1.442695
  %v823 = vpow.pop %v822
  %v824 = vmul.f32 %v798, 1.442695
  %v825 = vpow.pop %v824
  %v826 = vmul.f32 %v799, 1.442695
  %v827 = vpow.pop %v826
  %v828 = vmul.f32 %v800, 1.442695
  %v829 = vpow.pop %v828
  %v830 = vmul.f32 %v801, 1.442695
  %v831 = vpow.pop %v830
  %v832 = vmul.f32 %v802, 1.442695
  %v833 = vpow.pop %v832
  %v834 = vmul.f32 %v803, 1.442695
  %v835 = vpow.pop %v834
  %836 = vadd.xlane.f32.xlu0 %v805
  %v837 = vpop.xlane.xlu0 %836
  %838 = vadd.xlane.f32.xlu0 %v807
  %v839 = vpop.xlane.xlu0 %838
  %840 = vadd.xlane.f32.xlu0 %v809
  %v841 = vpop.xlane.xlu0 %840
  %842 = vadd.xlane.f32.xlu0 %v811
  %v843 = vpop.xlane.xlu0 %842
  %844 = vadd.xlane.f32.xlu0 %v813
  %v845 = vpop.xlane.xlu0 %844
  %846 = vadd.xlane.f32.xlu0 %v815
  %v847 = vpop.xlane.xlu0 %846
  %848 = vadd.xlane.f32.xlu0 %v817
  %v849 = vpop.xlane.xlu0 %848
  %850 = vadd.xlane.f32.xlu0 %v819
  %v851 = vpop.xlane.xlu0 %850
  %852 = vadd.xlane.f32.xlu0 %v821
  %v853 = vpop.xlane.xlu0 %852
  %854 = vadd.xlane.f32.xlu0 %v823
  %v855 = vpop.xlane.xlu0 %854
  %856 = vadd.xlane.f32.xlu0 %v825
  %v857 = vpop.xlane.xlu0 %856
  %858 = vadd.xlane.f32.xlu0 %v827
  %v859 = vpop.xlane.xlu0 %858
  %860 = vadd.xlane.f32.xlu0 %v829
  %v861 = vpop.xlane.xlu0 %860
  %862 = vadd.xlane.f32.xlu0 %v831
  %v863 = vpop.xlane.xlu0 %862
  %864 = vadd.xlane.f32.xlu0 %v833
  %v865 = vpop.xlane.xlu0 %864
  %866 = vadd.xlane.f32.xlu0 %v835
  %v867 = vpop.xlane.xlu0 %866
  %v868 = vlog2.pop %v837
  %v869 = vmul.f32 %v868, 0.6931472
  %v870 = vlog2.pop %v839
  %v871 = vmul.f32 %v870, 0.6931472
  %v872 = vlog2.pop %v841
  %v873 = vmul.f32 %v872, 0.6931472
  %v874 = vlog2.pop %v843
  %v875 = vmul.f32 %v874, 0.6931472
  %v876 = vlog2.pop %v845
  %v877 = vmul.f32 %v876, 0.6931472
  %v878 = vlog2.pop %v847
  %v879 = vmul.f32 %v878, 0.6931472
  %v880 = vlog2.pop %v849
  %v881 = vmul.f32 %v880, 0.6931472
  %v882 = vlog2.pop %v851
  %v883 = vmul.f32 %v882, 0.6931472
  %v884 = vlog2.pop %v853
  %v885 = vmul.f32 %v884, 0.6931472
  %v886 = vlog2.pop %v855
  %v887 = vmul.f32 %v886, 0.6931472
  %v888 = vlog2.pop %v857
  %v889 = vmul.f32 %v888, 0.6931472
  %v890 = vlog2.pop %v859
  %v891 = vmul.f32 %v890, 0.6931472
  %v892 = vlog2.pop %v861
  %v893 = vmul.f32 %v892, 0.6931472
  %v894 = vlog2.pop %v863
  %v895 = vmul.f32 %v894, 0.6931472
  %v896 = vlog2.pop %v865
  %v897 = vmul.f32 %v896, 0.6931472
  %v898 = vlog2.pop %v867
  %v899 = vmul.f32 %v898, 0.6931472
  %v900 = vsub.f32 %v788, %v869
  %v901 = vsub.f32 %v789, %v871
  %v902 = vsub.f32 %v790, %v873
  %v903 = vsub.f32 %v791, %v875
  %v904 = vsub.f32 %v792, %v877
  %v905 = vsub.f32 %v793, %v879
  %v906 = vsub.f32 %v794, %v881
  %v907 = vsub.f32 %v795, %v883
  %v908 = vsub.f32 %v796, %v885
  %v909 = vsub.f32 %v797, %v887
  %v910 = vsub.f32 %v798, %v889
  %v911 = vsub.f32 %v799, %v891
  %v912 = vsub.f32 %v800, %v893
  %v913 = vsub.f32 %v801, %v895
  %v914 = vsub.f32 %v802, %v897
  %v915 = vsub.f32 %v803, %v899
  %916 = vst [vmem:[%s5] sm:$0xff] %v900
  %917 = vst [vmem:[%s5 + $0x8] sm:$0xff] %v901
  %918 = vst [vmem:[%s5 + $0x10] sm:$0xff] %v902
  %919 = vst [vmem:[%s5 + $0x18] sm:$0xff] %v903
  %920 = vst [vmem:[%s5 + $0x20] sm:$0xff] %v904
  %921 = vst [vmem:[%s5 + $0x28] sm:$0xff] %v905
  %922 = vst [vmem:[%s5 + $0x30] sm:$0xff] %v906
  %923 = vst [vmem:[%s5 + $0x38] sm:$0xff] %v907
  %924 = vst [vmem:[%s5 + $0x40] sm:$0xff] %v908
  %925 = vst [vmem:[%s5 + $0x48] sm:$0xff] %v909
  %926 = vst [vmem:[%s5 + $0x50] sm:$0xff] %v910
  %927 = vst [vmem:[%s5 + $0x58] sm:$0xff] %v911
  %928 = vst [vmem:[%s5 + $0x60] sm:$0xff] %v912
  %929 = vst [vmem:[%s5 + $0x68] sm:$0xff] %v913
  %930 = vst [vmem:[%s5 + $0x70] sm:$0xff] %v914
  %931 = vst [vmem:[%s5 + $0x78] sm:$0xff] %v915
  // Predicated region
  $region22: #{forward.1} parent=0 // pred_check
    _
  $region23: #{forward.1} parent=0 // pred_check_branch
    %933 = sbr.rel (0) target = $region25
  $region24: #{forward.1} parent=0 // pred_region
    _
  $region25: #{forward.1} parent=0 // pred_fallthru
    _
  // Predicated region
  $region26: #{forward.1} parent=0 // pred_check
    _
  $region27: #{forward.1} parent=0 // pred_check_branch
    %935 = sbr.rel (0) target = $region29
  $region28: #{forward.1} parent=0 // pred_region
    _
  $region29: #{forward.1} parent=0 // pred_fallthru
    _

</llo_original>
